<compile_context>
chip_gen: v7x
topology: tpu7x:2x2x1
jax: 0.10.0
libtpu: 0.0.40
codegen_flags: <defaults>
</compile_context>

<pallas_src>
import functools

import jax
import jax.numpy as jnp
from jax import lax
from jax.experimental import pallas as pl
from jax.experimental.pallas import tpu as pltpu

_INV_SQRT2 = 0.7071067811865476
_FALLBACK_VMEM_LIMIT = 48 * 1024 * 1024  # safe on all generations if the info query fails


def _vmem_limit_bytes():
    """~70% of per-core VMEM capacity (generation-aware), with a conservative fallback."""
    try:
        cap = getattr(pltpu.get_tpu_info(), "vmem_capacity_bytes", None)
        if cap:
            return int(cap * 0.70)
    except Exception:
        pass
    return _FALLBACK_VMEM_LIMIT


def _resident_spec(block_shape, index_map):
    """BlockSpec for an operand whose block never changes across the grid.

    Single-buffered (pl.Buffered(1)): the DMA happens once and double-buffering would only
    double its VMEM footprint.  Falls back to a plain BlockSpec on older jax versions.
    """
    try:
        return pl.BlockSpec(block_shape, index_map, pipeline_mode=pl.Buffered(buffer_count=1))
    except Exception:
        return pl.BlockSpec(block_shape, index_map)


def _pick_phase1_batch_tile(B, in_dim, hidden, bottleneck, w1_bytes, w2_bytes, c_bytes, budget):
    resident = in_dim * hidden * w1_bytes + hidden * bottleneck * w2_bytes + (hidden + bottleneck) * 4

    def fits(tb):
        per = (2 * tb * in_dim * c_bytes          # x block (double-buffered)
               + 2 * tb * bottleneck * c_bytes    # zn output block (double-buffered)
               + 3 * tb * hidden * 4              # h + GELU temporaries (f32)
               + 2 * tb * bottleneck * 4)         # z + temporaries (f32)
        return resident + per <= budget

    for t in (1024, 512, 256, 128, 64, 32, 16, 8):
        if t <= B and B % t == 0 and fits(t):
            return t
    return B


def _pick_phase2_tiles(B, out_dim, bottleneck, v_bytes, c_bytes, budget):
    def fits(tb, tn):
        per = (2 * bottleneck * tn * v_bytes       # streamed v tile (double-buffered)
               + bottleneck * tn * (4 + c_bytes)   # f32 copy for the norm + w_last scratch
               + 2 * tb * bottleneck * c_bytes     # zn block (double-buffered)
               + 2 * tb * tn * 4)                  # f32 output block (double-buffered)
        return per <= budget

    tn = out_dim
    for t in (4096, 2048, 1024, 512, 256, 128):   # lane-dense (multiple of 128) output tiles
        if t <= out_dim and out_dim % t == 0 and fits(8, t):
            tn = t
            break
    tb = B
    for t in (1024, 512, 256, 128, 64, 32, 16, 8):
        if t <= B and B % t == 0 and fits(t, tn):
            tb = t
            break
    return tb, tn


def _mlp_norm_kernel(x_ref, w1_ref, b1_ref, w2_ref, b2_ref, zn_ref, *, compute_dtype):
    """GELU MLP + L2-normalize for one batch tile (weights resident, single-buffered)."""
    # The .astype calls are no-ops on the fast path (operands are passed pre-cast), so no
    # per-grid-step VPU cast of the resident weights.
    x = x_ref[...].astype(compute_dtype)
    w1 = w1_ref[...].astype(compute_dtype)
    h = jnp.dot(x, w1, preferred_element_type=jnp.float32) + b1_ref[...].astype(jnp.float32)
    # Exact erf GELU (torch nn.GELU default), in f32.
    h = 0.5 * h * (1.0 + lax.erf(h * _INV_SQRT2))
    w2 = w2_ref[...].astype(compute_dtype)
    z = (jnp.dot(h.astype(compute_dtype), w2, preferred_element_type=jnp.float32)
         + b2_ref[...].astype(jnp.float32))
    # F.normalize(dim=-1, eps=1e-12): clamp the squared sum at eps**2, rsqrt (EUP) + multiply.
    sq = jnp.sum(z * z, axis=-1, keepdims=True)
    zn_ref[...] = (z * lax.rsqrt(jnp.maximum(sq, 1e-24))).astype(zn_ref.dtype)


def _last_layer_kernel(zn_ref, v_ref, o_ref, w_scratch, *, compute_dtype):
    """Weight-normalized last layer.  Grid = (out_dim tiles, batch tiles), batch innermost."""
    # The bottleneck axis is never tiled, so each column norm is exact.  The v tile stays
    # resident across the inner batch loop; normalize + cast it exactly once per v tile.
    @pl.when(pl.program_id(1) == 0)
    def _():
        v32 = v_ref[...].astype(jnp.float32)
        # weight_norm with weight_g == 1: per output column, w = v / ||v||_2.
        inv_col = lax.rsqrt(jnp.sum(v32 * v32, axis=0, keepdims=True))
        w_scratch[...] = (v32 * inv_col).astype(w_scratch.dtype)

    zn = zn_ref[...].astype(compute_dtype)  # no-op: Phase 1 already emits compute_dtype
    o_ref[...] = jnp.dot(zn, w_scratch[...], preferred_element_type=jnp.float32).astype(o_ref.dtype)


@functools.partial(jax.jit, static_argnames=("compute_dtype", "tile_b", "tile_n", "tile_b2"))
def dino_head_forward(x, w1, b1, w2, b2, v, *, compute_dtype=jnp.bfloat16,
                      tile_b=None, tile_n=None, tile_b2=None):
    """x: [B, in_dim] -> [B, out_dim] (float32).

    For the fast path pass w1/w2/v as persistent compute_dtype (e.g. bf16) copies so no
    per-call / per-step casting of the large weights happens.
    """
    B, in_dim = x.shape
    hidden_dim = w1.shape[1]
    bottleneck_dim = w2.shape[1]
    out_dim = v.shape[1]

    vmem_limit = _vmem_limit_bytes()
    budget = int(vmem_limit * 0.80)  # headroom for Mosaic internal scratch / semaphores
    c_bytes = jnp.dtype(compute_dtype).itemsize

    tb = tile_b if tile_b is not None else _pick_phase1_batch_tile(
        B, in_dim, hidden_dim, bottleneck_dim,
        jnp.dtype(w1.dtype).itemsize, jnp.dtype(w2.dtype).itemsize, c_bytes, budget)
    tb2_auto, tn_auto = _pick_phase2_tiles(
        B, out_dim, bottleneck_dim, jnp.dtype(v.dtype).itemsize, c_bytes, budget)
    tn = tile_n if tile_n is not None else tn_auto
    tb2 = tile_b2 if tile_b2 is not None else tb2_auto

    x = x.astype(compute_dtype)  # single cast per call (no-op if already compute_dtype)

    # ---- Phase 1: zn = normalize(GELU(x @ w1 + b1) @ w2 + b2), grid over batch tiles. ----
    zn = pl.pallas_call(
        functools.partial(_mlp_norm_kernel, compute_dtype=compute_dtype),
        out_shape=jax.ShapeDtypeStruct((B, bottleneck_dim), compute_dtype),
        grid=(B // tb,),
        in_specs=[
            pl.BlockSpec((tb, in_dim), lambda i: (i, 0)),
            _resident_spec((in_dim, hidden_dim), lambda i: (0, 0)),          # resident weight
            _resident_spec((1, hidden_dim), lambda i: (0, 0)),               # resident bias
            _resident_spec((hidden_dim, bottleneck_dim), lambda i: (0, 0)),  # resident weight
            _resident_spec((1, bottleneck_dim), lambda i: (0, 0)),           # resident bias
        ],
        out_specs=pl.BlockSpec((tb, bottleneck_dim), lambda i: (i, 0)),
        compiler_params=pltpu.CompilerParams(
            dimension_semantics=("parallel",),
            vmem_limit_bytes=vmem_limit,
        ),
    )(x, w1, b1, w2, b2)

    # ---- Phase 2: out = zn @ (v / ||v||_col). Grid = (out tiles, batch tiles). ----
    # out_dim tiles are the OUTER axis and batch tiles the INNER axis, so each v tile is
    # streamed from HBM exactly once and its weight-norm is computed once (into w_scratch).
    out = pl.pallas_call(
        functools.partial(_last_layer_kernel, compute_dtype=compute_dtype),
        out_shape=jax.ShapeDtypeStruct((B, out_dim), jnp.float32),
        grid=(out_dim // tn, B // tb2),
        in_specs=[
            pl.BlockSpec((tb2, bottleneck_dim), lambda j, i: (i, 0)),  # small, re-streamed
            pl.BlockSpec((bottleneck_dim, tn), lambda j, i: (0, j)),   # one pass over v
        ],
        out_specs=pl.BlockSpec((tb2, tn), lambda j, i: (i, j)),
        scratch_shapes=[pltpu.VMEM((bottleneck_dim, tn), compute_dtype)],
        compiler_params=pltpu.CompilerParams(
            dimension_semantics=("parallel", "arbitrary"),
            vmem_limit_bytes=vmem_limit,
        ),
    )(zn, v)
    return out


def _reference_forward(x, w1, b1, w2, b2, v):
    hp = lax.Precision.HIGHEST
    h = jnp.dot(x, w1, precision=hp) + b1
    h = 0.5 * h * (1.0 + lax.erf(h * _INV_SQRT2))
    z = jnp.dot(h, w2, precision=hp) + b2
    zn = z / jnp.maximum(jnp.linalg.norm(z, axis=-1, keepdims=True), 1e-12)
    w_last = v / jnp.linalg.norm(v, axis=0, keepdims=True)
    return jnp.dot(zn, w_last, precision=hp)


if __name__ == "__main__":
    # Small shapes consistent with DINOHead(in_dim, out_dim, hidden_dim, bottleneck_dim).
    B, in_dim, hidden_dim, bottleneck_dim, out_dim = 16, 32, 64, 32, 256

    key = jax.random.PRNGKey(0)
    k_x, k_w1, k_b1, k_w2, k_b2, k_v = jax.random.split(key, 6)

    x = jax.random.normal(k_x, (B, in_dim), dtype=jnp.float32)
    w1 = jax.random.normal(k_w1, (in_dim, hidden_dim), dtype=jnp.float32) * 0.02
    b1 = jax.random.normal(k_b1, (1, hidden_dim), dtype=jnp.float32) * 0.02
    w2 = jax.random.normal(k_w2, (hidden_dim, bottleneck_dim), dtype=jnp.float32) * 0.02
    b2 = jax.random.normal(k_b2, (1, bottleneck_dim), dtype=jnp.float32) * 0.02
    # weight_norm "v" of last_layer (weight_g fixed to 1), transposed to [bottleneck, out].
    v = jax.random.normal(k_v, (bottleneck_dim, out_dim), dtype=jnp.float32) * 0.02

    ref = _reference_forward(x, w1, b1, w2, b2, v)

    # Exact-precision path with forced small tiles: exercises multi-step grids, resident
    # (single-buffered) weights, and the once-per-v-tile weight-norm init.
    out_f32 = dino_head_forward(x, w1, b1, w2, b2, v, compute_dtype=jnp.float32,
                                tile_b=8, tile_n=128, tile_b2=8)
    jax.block_until_ready(out_f32)
    assert out_f32.shape == (B, out_dim)
    assert jnp.allclose(out_f32, ref, atol=1e-3, rtol=1e-3)

    # Fast path: persistent bf16 copies of the weights (all per-step casts hoisted out of the
    # kernels), auto tile selection, bf16 MXU matmuls with f32 accumulation.
    cd = jnp.bfloat16
    w1c, w2c, vc = w1.astype(cd), w2.astype(cd), v.astype(cd)
    out = dino_head_forward(x, w1c, b1, w2c, b2, vc, compute_dtype=cd)
    jax.block_until_ready(out)
    assert out.shape == (B, out_dim)
    assert jnp.allclose(out, ref, atol=3e-2, rtol=3e-2)

    print("KERNEL_OK")
</pallas_src>

<mosaic_0001>
module attributes {stable_mosaic.version = 11 : i64} {
  func.func @_last_layer_kernel(%arg0: i32, %arg1: i32, %arg2: memref<8x32xf32, #tpu.memory_space<vmem>>, %arg3: memref<32x128xf32, #tpu.memory_space<vmem>>, %arg4: memref<8x128xf32, #tpu.memory_space<vmem>>, %arg5: memref<32x128xf32, #tpu.memory_space<vmem>>) attributes {dimension_semantics = [#tpu.dimension_semantics<parallel>, #tpu.dimension_semantics<arbitrary>], iteration_bounds = array<i64: 2, 2>, scalar_prefetch = 0 : i64, scratch_operands = 1 : i64, tpu.core_type = #tpu.core_type<tc>, window_params = [{transform_indices = @transform_0, window_bounds = array<i64: 8, 32>}, {transform_indices = @transform_1, window_bounds = array<i64: 32, 128>}, {transform_indices = @transform_2, window_bounds = array<i64: 8, 128>}]} {
    %c0_i32 = arith.constant 0 : i32
    %0 = arith.cmpi eq, %arg1, %c0_i32 : i32
    %1 = arith.extui %0 : i1 to i32
    %c0_i32_0 = arith.constant 0 : i32
    %2 = arith.cmpi ne, %1, %c0_i32_0 : i32
    scf.if %2 {
      %c0_6 = arith.constant 0 : index
      %c0_7 = arith.constant 0 : index
      %7 = vector.load %arg3[%c0_6, %c0_7] : memref<32x128xf32, #tpu.memory_space<vmem>>, vector<32x128xf32>
      %8 = arith.mulf %7, %7 : vector<32x128xf32>
      %cst_8 = arith.constant dense<0.000000e+00> : vector<128xf32>
      %9 = vector.multi_reduction <add>, %8, %cst_8 [0] : vector<32x128xf32> to vector<128xf32>
      %10 = vector.shape_cast %9 : vector<128xf32> to vector<1x128xf32>
      %11 = math.rsqrt %10 : vector<1x128xf32>
      %12 = vector.broadcast %11 : vector<1x128xf32> to vector<32x128xf32>
      %13 = arith.mulf %7, %12 : vector<32x128xf32>
      %c0_9 = arith.constant 0 : index
      %c0_10 = arith.constant 0 : index
      %14 = vector.load %arg5[%c0_9, %c0_10] : memref<32x128xf32, #tpu.memory_space<vmem>>, vector<32x128xf32>
      tpu.vector_store %arg5[%c0_9, %c0_10], %13 {strides = array<i32>} : memref<32x128xf32, #tpu.memory_space<vmem>>, vector<32x128xf32>,
    } else {
    }
    %c0 = arith.constant 0 : index
    %c0_1 = arith.constant 0 : index
    %3 = vector.load %arg2[%c0, %c0_1] : memref<8x32xf32, #tpu.memory_space<vmem>>, vector<8x32xf32>
    %c0_2 = arith.constant 0 : index
    %c0_3 = arith.constant 0 : index
    %4 = vector.load %arg5[%c0_2, %c0_3] : memref<32x128xf32, #tpu.memory_space<vmem>>, vector<32x128xf32>
    %cst = arith.constant dense<0.000000e+00> : vector<8x128xf32>
    %5 = tpu.matmul %3, %4, %cst {dimension_numbers = #tpu.dot_dimension_numbers<[1], [0], [0], [1], [0, 0, 1, 1], [], []>} : vector<8x32xf32>, vector<32x128xf32>, vector<8x128xf32> -> vector<8x128xf32>
    %c0_4 = arith.constant 0 : index
    %c0_5 = arith.constant 0 : index
    %6 = vector.load %arg4[%c0_4, %c0_5] : memref<8x128xf32, #tpu.memory_space<vmem>>, vector<8x128xf32>
    tpu.vector_store %arg4[%c0_4, %c0_5], %5 {strides = array<i32>} : memref<8x128xf32, #tpu.memory_space<vmem>>, vector<8x128xf32>,
    return
  }
  func.func @transform_0(%arg0: i32, %arg1: i32) -> (i32, i32) {
    %c0_i32 = arith.constant 0 : i32
    %c0_i32_0 = arith.constant 0 : i32
    return %arg1, %c0_i32 : i32, i32
  }
  func.func @transform_1(%arg0: i32, %arg1: i32) -> (i32, i32) {
    %c0_i32 = arith.constant 0 : i32
    %c0_i32_0 = arith.constant 0 : i32
    return %c0_i32, %arg0 : i32, i32
  }
  func.func @transform_2(%arg0: i32, %arg1: i32) -> (i32, i32) {
    %c0_i32 = arith.constant 0 : i32
    return %arg1, %arg0 : i32, i32
  }
}

module attributes {stable_mosaic.version = 11 : i64} {
  func.func @_mlp_norm_kernel(%arg0: i32, %arg1: memref<8x32xf32, #tpu.memory_space<vmem>>, %arg2: memref<32x64xf32, #tpu.memory_space<vmem>>, %arg3: memref<1x64xf32, #tpu.memory_space<vmem>>, %arg4: memref<64x32xf32, #tpu.memory_space<vmem>>, %arg5: memref<1x32xf32, #tpu.memory_space<vmem>>, %arg6: memref<8x32xf32, #tpu.memory_space<vmem>>) attributes {dimension_semantics = [#tpu.dimension_semantics<parallel>], iteration_bounds = array<i64: 2>, scalar_prefetch = 0 : i64, scratch_operands = 0 : i64, tpu.core_type = #tpu.core_type<tc>, window_params = [{transform_indices = @transform_0, window_bounds = array<i64: 8, 32>}, {pipeline_mode = #tpu.pipeline_mode<synchronous>, transform_indices = @transform_1, window_bounds = array<i64: 32, 64>}, {pipeline_mode = #tpu.pipeline_mode<synchronous>, transform_indices = @transform_2, window_bounds = array<i64: 1, 64>}, {pipeline_mode = #tpu.pipeline_mode<synchronous>, transform_indices = @transform_3, window_bounds = array<i64: 64, 32>}, {pipeline_mode = #tpu.pipeline_mode<synchronous>, transform_indices = @transform_4, window_bounds = array<i64: 1, 32>}, {transform_indices = @transform_5, window_bounds = array<i64: 8, 32>}]} {
    %c0 = arith.constant 0 : index
    %c0_0 = arith.constant 0 : index
    %0 = vector.load %arg1[%c0, %c0_0] : memref<8x32xf32, #tpu.memory_space<vmem>>, vector<8x32xf32>
    %c0_1 = arith.constant 0 : index
    %c0_2 = arith.constant 0 : index
    %1 = vector.load %arg2[%c0_1, %c0_2] : memref<32x64xf32, #tpu.memory_space<vmem>>, vector<32x64xf32>
    %cst = arith.constant dense<0.000000e+00> : vector<8x64xf32>
    %2 = tpu.matmul %0, %1, %cst {dimension_numbers = #tpu.dot_dimension_numbers<[1], [0], [0], [1], [0, 0, 1, 1], [], []>} : vector<8x32xf32>, vector<32x64xf32>, vector<8x64xf32> -> vector<8x64xf32>
    %c0_3 = arith.constant 0 : index
    %c0_4 = arith.constant 0 : index
    %3 = vector.load %arg3[%c0_3, %c0_4] : memref<1x64xf32, #tpu.memory_space<vmem>>, vector<1x64xf32>
    %4 = vector.broadcast %3 : vector<1x64xf32> to vector<8x64xf32>
    %5 = arith.addf %2, %4 : vector<8x64xf32>
    %cst_5 = arith.constant 5.000000e-01 : f32
    %6 = vector.broadcast %cst_5 : f32 to vector<8x64xf32>
    %7 = arith.mulf %6, %5 : vector<8x64xf32>
    %cst_6 = arith.constant 0.707106769 : f32
    %8 = vector.broadcast %cst_6 : f32 to vector<8x64xf32>
    %9 = arith.mulf %5, %8 : vector<8x64xf32>
    %10 = math.erf %9 : vector<8x64xf32>
    %cst_7 = arith.constant 1.000000e+00 : f32
    %11 = vector.broadcast %cst_7 : f32 to vector<8x64xf32>
    %12 = arith.addf %11, %10 : vector<8x64xf32>
    %13 = arith.mulf %7, %12 : vector<8x64xf32>
    %c0_8 = arith.constant 0 : index
    %c0_9 = arith.constant 0 : index
    %14 = vector.load %arg4[%c0_8, %c0_9] : memref<64x32xf32, #tpu.memory_space<vmem>>, vector<64x32xf32>
    %cst_10 = arith.constant dense<0.000000e+00> : vector<8x32xf32>
    %15 = tpu.matmul %13, %14, %cst_10 {dimension_numbers = #tpu.dot_dimension_numbers<[1], [0], [0], [1], [0, 0, 1, 1], [], []>} : vector<8x64xf32>, vector<64x32xf32>, vector<8x32xf32> -> vector<8x32xf32>
    %c0_11 = arith.constant 0 : index
    %c0_12 = arith.constant 0 : index
    %16 = vector.load %arg5[%c0_11, %c0_12] : memref<1x32xf32, #tpu.memory_space<vmem>>, vector<1x32xf32>
    %17 = vector.broadcast %16 : vector<1x32xf32> to vector<8x32xf32>
    %18 = arith.addf %15, %17 : vector<8x32xf32>
    %19 = arith.mulf %18, %18 : vector<8x32xf32>
    %cst_13 = arith.constant dense<0.000000e+00> : vector<8xf32>
    %20 = vector.multi_reduction <add>, %19, %cst_13 [1] : vector<8x32xf32> to vector<8xf32>
    %21 = vector.shape_cast %20 : vector<8xf32> to vector<8x1xf32>
    %cst_14 = arith.constant 1.000000e-24 : f32
    %22 = vector.broadcast %cst_14 : f32 to vector<8x1xf32>
    %23 = arith.maximumf %21, %22 : vector<8x1xf32>
    %24 = math.rsqrt %23 : vector<8x1xf32>
    %25 = vector.broadcast %24 : vector<8x1xf32> to vector<8x32xf32>
    %26 = arith.mulf %18, %25 : vector<8x32xf32>
    %c0_15 = arith.constant 0 : index
    %c0_16 = arith.constant 0 : index
    %27 = vector.load %arg6[%c0_15, %c0_16] : memref<8x32xf32, #tpu.memory_space<vmem>>, vector<8x32xf32>
    tpu.vector_store %arg6[%c0_15, %c0_16], %26 {strides = array<i32>} : memref<8x32xf32, #tpu.memory_space<vmem>>, vector<8x32xf32>,
    return
  }
  func.func @transform_0(%arg0: i32) -> (i32, i32) {
    %c0_i32 = arith.constant 0 : i32
    %c0_i32_0 = arith.constant 0 : i32
    return %arg0, %c0_i32 : i32, i32
  }
  func.func @transform_1(%arg0: i32) -> (i32, i32) {
    %c0_i32 = arith.constant 0 : i32
    %c0_i32_0 = arith.constant 0 : i32
    %c0_i32_1 = arith.constant 0 : i32
    return %c0_i32, %c0_i32_0 : i32, i32
  }
  func.func @transform_2(%arg0: i32) -> (i32, i32) {
    %c0_i32 = arith.constant 0 : i32
    %c0_i32_0 = arith.constant 0 : i32
    %c0_i32_1 = arith.constant 0 : i32
    return %c0_i32, %c0_i32_0 : i32, i32
  }
  func.func @transform_3(%arg0: i32) -> (i32, i32) {
    %c0_i32 = arith.constant 0 : i32
    %c0_i32_0 = arith.constant 0 : i32
    %c0_i32_1 = arith.constant 0 : i32
    return %c0_i32, %c0_i32_0 : i32, i32
  }
  func.func @transform_4(%arg0: i32) -> (i32, i32) {
    %c0_i32 = arith.constant 0 : i32
    %c0_i32_0 = arith.constant 0 : i32
    %c0_i32_1 = arith.constant 0 : i32
    return %c0_i32, %c0_i32_0 : i32, i32
  }
  func.func @transform_5(%arg0: i32) -> (i32, i32) {
    %c0_i32 = arith.constant 0 : i32
    %c0_i32_0 = arith.constant 0 : i32
    return %arg0, %c0_i32 : i32, i32
  }
}

</mosaic_0001>

<llo_original>
// kernel: dino_head_forward.2
$region0: #{dino_head_forward.2}
  #allocation0 [shape = 'u32[]', space=smem, size = 0x4, offset = 0x4, fixed_abs, tag = 'smem constant byte address 0x4 - core index']
  #allocation1 [shape = 'u32[144,128]{1,0:T(1,128)}', space=vmem, size = 0x12000, scoped, tag = 'internal scratch']
  %s0 = inlined_call_operand.vmem [shape: f32[16,32], index: 0, kind: input, shape index: {}]
  %s1 = inlined_call_operand.vmem [shape: f32[32,64], index: 1, kind: input, shape index: {}]
  %s2 = inlined_call_operand.vmem [shape: f32[1,64], index: 2, kind: input, shape index: {}]
  %s3 = inlined_call_operand.vmem [shape: f32[64,32], index: 3, kind: input, shape index: {}]
  %s4 = inlined_call_operand.vmem [shape: f32[1,32], index: 4, kind: input, shape index: {}]
  %s5 = inlined_call_operand.vmem [shape: f32[16,32], index: 5, kind: output, shape index: {}]
  %s6 = sld [smem:[#allocation0]]
  $region53: #{dino_head_forward.2} parent=0
    _
  %s8 = ssub.s32 1, %s6
  %s9 = scalar_select 0, %s8, %s6
  loop: start=0, step=1, limit=4
  $region2: #{dino_head_forward.2} parent=0 // loop_pre_header
    _
  $region3: #{dino_head_forward.2} parent=0 // loop_header
    %s11 = sphi 0, %s15
    %p12 = scmp.ge.s32.totalorder %s11, 4
    %s21 = sphi 0, %s23
    %s24 = sphi 0, %s21
    %s25 = sphi 0, %s24
    %s41 = sphi 0, %s25
    %s45 = sphi 0, %s45
    %s47 = sphi 0, %s45
    %s48 = sphi 0, %s47
    %s62 = sphi 0, %s48
    %s66 = sphi 0, %s66
    %s68 = sphi 0, %s66
    %s69 = sphi 0, %s68
    %s83 = sphi 0, %s69
    %s87 = sphi 0, %s87
    %s89 = sphi 0, %s87
    %s90 = sphi 0, %s89
    %s104 = sphi 0, %s90
    %s108 = sphi 0, %s108
    %s110 = sphi 0, %s108
    %s111 = sphi 0, %s110
    %s125 = sphi 0, %s111
    %s131 = sphi 0, %s133
    %s134 = sphi 0, %s131
    %s135 = sphi 0, %s134
    %s151 = sphi 0, %s135
  $region4: #{dino_head_forward.2} parent=0 // loop_header_branch
    %14 = sbr.rel (%p12) target = $region8
  $region5: #{dino_head_forward.2} parent=0 // loop_body
    %s16 = ssub.s32 %s11, 1
    %s17 = ssub.s32 %s11, 2
    %s18 = sadd.s32 %s11, 1
    %s19 = ssub.s32 %s11, %s18
    %p20 = scmp.eq.s32.totalorder %s19, 0
    %s22 = sadd.s32 %s21, 1
    %s23 = scalar_select %p20, %s21, %s22
    %p26 = pneg %p20
    %p27 = scmp.eq.s32.totalorder %s11, 1
    %p28 = por %p26, %p27
    %p29 = scmp.ne.s32.totalorder %s21, %s24
    %p30 = scmp.eq.s32.totalorder %s11, 0
    %p31 = por %p29, %p30
    %p32 = scmp.ne.s32.totalorder %s21, %s24
    %p33 = scmp.eq.s32.totalorder %s16, 1
    %p34 = por %p32, %p33
    %p35 = scmp.ne.s32.totalorder %s24, %s25
    %p36 = scmp.eq.s32.totalorder %s16, 0
    %p37 = por %p35, %p36
    %p38 = scmp.ne.s32.totalorder %s24, %s25
    %p39 = scmp.eq.s32.totalorder %s17, 1
    %p40 = por %p38, %p39
    %p42 = scmp.ne.s32.totalorder %s25, %s41
    %p43 = scmp.eq.s32.totalorder %s17, 0
    %p44 = por %p42, %p43
    %s46 = sadd.s32 %s45, 1
    %p49 = scmp.eq.s32.totalorder %s11, 1
    %p50 = scmp.ne.s32.totalorder %s45, %s47
    %p51 = scmp.eq.s32.totalorder %s11, 0
    %p52 = por %p50, %p51
    %p53 = scmp.ne.s32.totalorder %s45, %s47
    %p54 = scmp.eq.s32.totalorder %s16, 1
    %p55 = por %p53, %p54
    %p56 = scmp.ne.s32.totalorder %s47, %s48
    %p57 = scmp.eq.s32.totalorder %s16, 0
    %p58 = por %p56, %p57
    %p59 = scmp.ne.s32.totalorder %s47, %s48
    %p60 = scmp.eq.s32.totalorder %s17, 1
    %p61 = por %p59, %p60
    %p63 = scmp.ne.s32.totalorder %s48, %s62
    %p64 = scmp.eq.s32.totalorder %s17, 0
    %p65 = por %p63, %p64
    %s67 = sadd.s32 %s66, 1
    %p70 = scmp.eq.s32.totalorder %s11, 1
    %p71 = scmp.ne.s32.totalorder %s66, %s68
    %p72 = scmp.eq.s32.totalorder %s11, 0
    %p73 = por %p71, %p72
    %p74 = scmp.ne.s32.totalorder %s66, %s68
    %p75 = scmp.eq.s32.totalorder %s16, 1
    %p76 = por %p74, %p75
    %p77 = scmp.ne.s32.totalorder %s68, %s69
    %p78 = scmp.eq.s32.totalorder %s16, 0
    %p79 = por %p77, %p78
    %p80 = scmp.ne.s32.totalorder %s68, %s69
    %p81 = scmp.eq.s32.totalorder %s17, 1
    %p82 = por %p80, %p81
    %p84 = scmp.ne.s32.totalorder %s69, %s83
    %p85 = scmp.eq.s32.totalorder %s17, 0
    %p86 = por %p84, %p85
    %s88 = sadd.s32 %s87, 1
    %p91 = scmp.eq.s32.totalorder %s11, 1
    %p92 = scmp.ne.s32.totalorder %s87, %s89
    %p93 = scmp.eq.s32.totalorder %s11, 0
    %p94 = por %p92, %p93
    %p95 = scmp.ne.s32.totalorder %s87, %s89
    %p96 = scmp.eq.s32.totalorder %s16, 1
    %p97 = por %p95, %p96
    %p98 = scmp.ne.s32.totalorder %s89, %s90
    %p99 = scmp.eq.s32.totalorder %s16, 0
    %p100 = por %p98, %p99
    %p101 = scmp.ne.s32.totalorder %s89, %s90
    %p102 = scmp.eq.s32.totalorder %s17, 1
    %p103 = por %p101, %p102
    %p105 = scmp.ne.s32.totalorder %s90, %s104
    %p106 = scmp.eq.s32.totalorder %s17, 0
    %p107 = por %p105, %p106
    %s109 = sadd.s32 %s108, 1
    %p112 = scmp.eq.s32.totalorder %s11, 1
    %p113 = scmp.ne.s32.totalorder %s108, %s110
    %p114 = scmp.eq.s32.totalorder %s11, 0
    %p115 = por %p113, %p114
    %p116 = scmp.ne.s32.totalorder %s108, %s110
    %p117 = scmp.eq.s32.totalorder %s16, 1
    %p118 = por %p116, %p117
    %p119 = scmp.ne.s32.totalorder %s110, %s111
    %p120 = scmp.eq.s32.totalorder %s16, 0
    %p121 = por %p119, %p120
    %p122 = scmp.ne.s32.totalorder %s110, %s111
    %p123 = scmp.eq.s32.totalorder %s17, 1
    %p124 = por %p122, %p123
    %p126 = scmp.ne.s32.totalorder %s111, %s125
    %p127 = scmp.eq.s32.totalorder %s17, 0
    %p128 = por %p126, %p127
    %s129 = ssub.s32 %s11, %s18
    %p130 = scmp.eq.s32.totalorder %s129, 0
    %s132 = sadd.s32 %s131, 1
    %s133 = scalar_select %p130, %s131, %s132
    %p136 = pneg %p130
    %p137 = scmp.eq.s32.totalorder %s11, 1
    %p138 = por %p136, %p137
    %p139 = scmp.ne.s32.totalorder %s131, %s134
    %p140 = scmp.eq.s32.totalorder %s11, 0
    %p141 = por %p139, %p140
    %p142 = scmp.ne.s32.totalorder %s131, %s134
    %p143 = scmp.eq.s32.totalorder %s16, 1
    %p144 = por %p142, %p143
    %p145 = scmp.ne.s32.totalorder %s134, %s135
    %p146 = scmp.eq.s32.totalorder %s16, 0
    %p147 = por %p145, %p146
    %p148 = scmp.ne.s32.totalorder %s134, %s135
    %p149 = scmp.eq.s32.totalorder %s17, 1
    %p150 = por %p148, %p149
    %p152 = scmp.ne.s32.totalorder %s135, %s151
    %p153 = scmp.eq.s32.totalorder %s17, 0
    %p154 = por %p152, %p153
    %p155 = scmp.le.s32.totalorder 1, %s11
    %p156 = scmp.lt.s32.totalorder %s11, 3
    %p157 = pnand %p155, %p156
    %p158 = pneg %p157
    // Predicated region
    $region9: #{dino_head_forward.2} parent=5 // pred_check
      _
    $region10: #{dino_head_forward.2} parent=5 // pred_check_branch
      %160 = sbr.rel (%p157) target = $region12
    $region11: #{dino_head_forward.2} parent=5 // pred_region
      %s161 = ssub.s32 %s11, 1
      // Predicated region
      $region13: #{dino_head_forward.2} parent=11 // pred_check
        %p162 = pneg %p58
      $region14: #{dino_head_forward.2} parent=11 // pred_check_branch
        %164 = sbr.rel (%p162) target = $region16
      $region15: #{dino_head_forward.2} parent=11 // pred_region
        _
      $region16: #{dino_head_forward.2} parent=11 // pred_fallthru
        _
      // Predicated region
      $region17: #{dino_head_forward.2} parent=11 // pred_check
        %p165 = pneg %p79
      $region18: #{dino_head_forward.2} parent=11 // pred_check_branch
        %167 = sbr.rel (%p165) target = $region20
      $region19: #{dino_head_forward.2} parent=11 // pred_region
        _
      $region20: #{dino_head_forward.2} parent=11 // pred_fallthru
        _
      // Predicated region
      $region21: #{dino_head_forward.2} parent=11 // pred_check
        %p168 = pneg %p100
      $region22: #{dino_head_forward.2} parent=11 // pred_check_branch
        %170 = sbr.rel (%p168) target = $region24
      $region23: #{dino_head_forward.2} parent=11 // pred_region
        _
      $region24: #{dino_head_forward.2} parent=11 // pred_fallthru
        _
      // Predicated region
      $region25: #{dino_head_forward.2} parent=11 // pred_check
        %p171 = pneg %p121
      $region26: #{dino_head_forward.2} parent=11 // pred_check_branch
        %173 = sbr.rel (%p171) target = $region28
      $region27: #{dino_head_forward.2} parent=11 // pred_region
        _
      $region28: #{dino_head_forward.2} parent=11 // pred_fallthru
        _
    $region12: #{dino_head_forward.2} parent=5 // pred_fallthru
      _
    %p174 = scmp.lt.s32.totalorder %s11, 2
    // Predicated region
    $region29: #{dino_head_forward.2} parent=5 // pred_check
      %p175 = pneg %p174
    $region30: #{dino_head_forward.2} parent=5 // pred_check_branch
      %177 = sbr.rel (%p175) target = $region32
    $region31: #{dino_head_forward.2} parent=5 // pred_region
      // Predicated region
      $region33: #{dino_head_forward.2} parent=31 // pred_check
        %p178 = pneg %p31
      $region34: #{dino_head_forward.2} parent=31 // pred_check_branch
        %180 = sbr.rel (%p178) target = $region36
      $region35: #{dino_head_forward.2} parent=31 // pred_region
        %p181 = scmp.lt.s32.totalorder %s11, 1
        %s182 = scalar_select %p181, %s11, 1
        %s183 = smul.addr %s182, 8
        %s184 = scalar_lea.vmem %s0, %s183
      $region36: #{dino_head_forward.2} parent=31 // pred_fallthru
        _
    $region32: #{dino_head_forward.2} parent=5 // pred_fallthru
      _
    %p185 = scmp.le.s32.totalorder 1, %s11
    %p186 = scmp.lt.s32.totalorder %s11, 3
    %p187 = pnand %p185, %p186
    %p188 = pneg %p187
    // Predicated region
    $region37: #{dino_head_forward.2} parent=5 // pred_check
      _
    $region38: #{dino_head_forward.2} parent=5 // pred_check_branch
      %190 = sbr.rel (%p187) target = $region40
    $region39: #{dino_head_forward.2} parent=5 // pred_region
      %s191 = ssub.s32 %s11, 1
      %p192 = scmp.lt.s32.totalorder %s16, 1
      %s193 = scalar_select %p192, %s16, 1
      %s194 = smul.addr %s193, 8
      %s195 = scalar_lea.vmem %s0, %s194
      %p196 = pneg %p37
      %p197 = pneg %p34
      %p198 = pneg %p58
      %p199 = pneg %p55
      %p200 = pneg %p79
      %p201 = pneg %p76
      %p202 = pneg %p100
      %p203 = pneg %p97
      %p204 = pneg %p121
      %p205 = pneg %p118
      %p206 = pneg %p147
      %p207 = pneg %p144
      %p208 = scmp.lt.s32.totalorder %s16, 1
      %s209 = scalar_select %p208, %s16, 1
      %s210 = smul.addr %s209, 8
      %s211 = scalar_lea.vmem %s5, %s210
      %p212 = scmp.lt.s32.totalorder %s16, 1
      %s213 = scalar_select %p212, %s16, 1
      %s214 = smul.addr %s213, 8
      %s215 = scalar_lea.vmem %s0, %s214
      %p216 = scmp.lt.s32.totalorder %s16, 1
      %s217 = scalar_select %p216, %s16, 1
      %s218 = smul.addr %s217, 8
      %s219 = scalar_lea.vmem %s5, %s218
      %v220 = vld [vmem:[%s215] sm:$0xff]
      %v221 = vld [vmem:[%s1] sm:$0xff]
      %v222 = vld [vmem:[%s1 + $0x8] sm:$0xff]
      %v223 = vld [vmem:[%s1 + $0x10] sm:$0xff]
      %v224 = vld [vmem:[%s1 + $0x18] sm:$0xff]
      %v225 = vld [vmem:[%s2] sm:$0x1]
      %v227 = vlaneseq
      %v228 = vshrl.u32 %v227, 7
      %v229 = vsub.s32 0, %v228
      %v230 = vrot.slane %v225, %v229
      %vm232 = vcmask 261120
      %v234 = vsel %vm232, %v220, 0
      %236 = vmatprep.subr.mxu0 0.0
      %237 = vmatpush1.msra.mxu0 %v221
      %238 = vmatprep.subr.mxu0 0.0
      %239 = vmatpush1.msra.mxu0 %v222
      %240 = vmatprep.subr.mxu0 0.0
      %241 = vmatpush1.msra.mxu0 %v223
      %242 = vmatprep.subr.mxu0 0.0
      %243 = vmatpush1.msra.mxu0 %v224
      %244 = vmatprep.subr.mxu0 0.0
      %245 = vmatpush1.msra.mxu0 0.0
      %246 = vmatprep.subr.mxu0 0.0
      %247 = vmatpush1.msra.mxu0 0.0
      %248 = vmatprep.subr.mxu0 0.0
      %249 = vmatpush1.msra.mxu0 0.0
      %250 = vmatprep.subr.mxu0 0.0
      %251 = vmatpush1.msra.mxu0 0.0
      %252 = vmatprep.subr.mxu0 0.0
      %253 = vmatpush1.msra.mxu0 0.0
      %254 = vmatprep.subr.mxu0 0.0
      %255 = vmatpush1.msra.mxu0 0.0
      %256 = vmatprep.subr.mxu0 0.0
      %257 = vmatpush1.msra.mxu0 0.0
      %258 = vmatprep.subr.mxu0 0.0
      %259 = vmatpush1.msra.mxu0 0.0
      %260 = vmatprep.subr.mxu0 0.0
      %261 = vmatpush1.msra.mxu0 0.0
      %262 = vmatprep.subr.mxu0 0.0
      %263 = vmatpush1.msra.mxu0 0.0
      %264 = vmatprep.subr.mxu0 0.0
      %265 = vmatpush1.msra.mxu0 0.0
      %266 = vmatprep.subr.mxu0 0.0
      %267 = vmatpush1.msra.mxu0 0.0
      %268 = vmatprep.subr.mxu0 0.0
      %269 = vmatpush1.msra.mxu0 0.0
      %270 = vmatprep.subr.mxu0 0.0
      %271 = vmatpush1.msra.mxu0 0.0
      %272 = vmatprep.subr.mxu0 0.0
      %273 = vmatpush1.msra.mxu0 0.0
      %274 = vmatprep.subr.mxu0 0.0
      %275 = vmatpush1.msra.mxu0 0.0
      %276 = vmatprep.subr.mxu0 0.0
      %277 = vmatpush1.msra.mxu0 0.0
      %278 = vmatprep.subr.mxu0 0.0
      %279 = vmatpush1.msra.mxu0 0.0
      %280 = vmatprep.subr.mxu0 0.0
      %281 = vmatpush1.msra.mxu0 0.0
      %282 = vmatprep.subr.mxu0 0.0
      %283 = vmatpush1.msra.mxu0 0.0
      %284 = vmatprep.subr.mxu0 0.0
      %285 = vmatpush1.msra.mxu0 0.0
      %286 = vmatprep.subr.mxu0 0.0
      %287 = vmatpush1.msra.mxu0 0.0
      %288 = vmatprep.subr.mxu0 0.0
      %289 = vmatpush1.msra.mxu0 0.0
      %290 = vmatprep.subr.mxu0 0.0
      %291 = vmatpush1.msra.mxu0 0.0
      %292 = vmatprep.subr.mxu0 0.0
      %293 = vmatpush1.msra.mxu0 0.0
      %294 = vmatprep.subr.mxu0 0.0
      %295 = vmatpush1.msra.mxu0 0.0
      %296 = vmatprep.subr.mxu0 0.0
      %297 = vmatpush1.msra.mxu0 0.0
      %298 = vmatprep.subr.mxu0 0.0
      %299 = vmatpush1.msra.mxu0 0.0
      %300 = vmatprep.mubr.f32.mxu0 0.0
      %301 = vmatmul.mubr.f32.gmra.mrb[0].mxu0 %v234
      %v302 = vpop.f32.mrb[0].mxu0
      %v303 = vadd.f32 %v230, %v302
      %v304 = vpop.f32.mrb[0].mxu0
      %305 = vdwg.mxu0
      %v306 = vmul.f32 %v303, 0.5
      %v307 = vmul.f32 %v303, 0.70710677
      %v308 = verf.f32.pop %v307
      %v309 = vadd.f32 %v308, 1.0
      %v310 = vmul.f32 %v306, %v309
      %v311 = vld [vmem:[%s3] sm:$0xff]
      %v312 = vld [vmem:[%s3 + $0x8] sm:$0xff]
      %v313 = vld [vmem:[%s3 + $0x10] sm:$0xff]
      %v314 = vld [vmem:[%s3 + $0x18] sm:$0xff]
      %v315 = vld [vmem:[%s3 + $0x20] sm:$0xff]
      %v316 = vld [vmem:[%s3 + $0x28] sm:$0xff]
      %v317 = vld [vmem:[%s3 + $0x30] sm:$0xff]
      %v318 = vld [vmem:[%s3 + $0x38] sm:$0xff]
      %v319 = vld [vmem:[%s4] sm:$0x1]
      %v321 = vlaneseq
      %v322 = vshrl.u32 %v321, 7
      %v323 = vsub.s32 0, %v322
      %v324 = vrot.slane %v319, %v323
      %vm326 = vcmask 523264
      %v328 = vsel %vm326, %v310, 0
      %330 = vmatprep.subr.mxu0 0.0
      %331 = vmatpush1.msra.mxu0 %v311
      %332 = vmatprep.subr.mxu0 0.0
      %333 = vmatpush1.msra.mxu0 %v312
      %334 = vmatprep.subr.mxu0 0.0
      %335 = vmatpush1.msra.mxu0 %v313
      %336 = vmatprep.subr.mxu0 0.0
      %337 = vmatpush1.msra.mxu0 %v314
      %338 = vmatprep.subr.mxu0 0.0
      %339 = vmatpush1.msra.mxu0 %v315
      %340 = vmatprep.subr.mxu0 0.0
      %341 = vmatpush1.msra.mxu0 %v316
      %342 = vmatprep.subr.mxu0 0.0
      %343 = vmatpush1.msra.mxu0 %v317
      %344 = vmatprep.subr.mxu0 0.0
      %345 = vmatpush1.msra.mxu0 %v318
      %346 = vmatprep.subr.mxu0 0.0
      %347 = vmatpush1.msra.mxu0 0.0
      %348 = vmatprep.subr.mxu0 0.0
      %349 = vmatpush1.msra.mxu0 0.0
      %350 = vmatprep.subr.mxu0 0.0
      %351 = vmatpush1.msra.mxu0 0.0
      %352 = vmatprep.subr.mxu0 0.0
      %353 = vmatpush1.msra.mxu0 0.0
      %354 = vmatprep.subr.mxu0 0.0
      %355 = vmatpush1.msra.mxu0 0.0
      %356 = vmatprep.subr.mxu0 0.0
      %357 = vmatpush1.msra.mxu0 0.0
      %358 = vmatprep.subr.mxu0 0.0
      %359 = vmatpush1.msra.mxu0 0.0
      %360 = vmatprep.subr.mxu0 0.0
      %361 = vmatpush1.msra.mxu0 0.0
      %362 = vmatprep.subr.mxu0 0.0
      %363 = vmatpush1.msra.mxu0 0.0
      %364 = vmatprep.subr.mxu0 0.0
      %365 = vmatpush1.msra.mxu0 0.0
      %366 = vmatprep.subr.mxu0 0.0
      %367 = vmatpush1.msra.mxu0 0.0
      %368 = vmatprep.subr.mxu0 0.0
      %369 = vmatpush1.msra.mxu0 0.0
      %370 = vmatprep.subr.mxu0 0.0
      %371 = vmatpush1.msra.mxu0 0.0
      %372 = vmatprep.subr.mxu0 0.0
      %373 = vmatpush1.msra.mxu0 0.0
      %374 = vmatprep.subr.mxu0 0.0
      %375 = vmatpush1.msra.mxu0 0.0
      %376 = vmatprep.subr.mxu0 0.0
      %377 = vmatpush1.msra.mxu0 0.0
      %378 = vmatprep.subr.mxu0 0.0
      %379 = vmatpush1.msra.mxu0 0.0
      %380 = vmatprep.subr.mxu0 0.0
      %381 = vmatpush1.msra.mxu0 0.0
      %382 = vmatprep.subr.mxu0 0.0
      %383 = vmatpush1.msra.mxu0 0.0
      %384 = vmatprep.subr.mxu0 0.0
      %385 = vmatpush1.msra.mxu0 0.0
      %386 = vmatprep.subr.mxu0 0.0
      %387 = vmatpush1.msra.mxu0 0.0
      %388 = vmatprep.subr.mxu0 0.0
      %389 = vmatpush1.msra.mxu0 0.0
      %390 = vmatprep.subr.mxu0 0.0
      %391 = vmatpush1.msra.mxu0 0.0
      %392 = vmatprep.subr.mxu0 0.0
      %393 = vmatpush1.msra.mxu0 0.0
      %394 = vmatprep.mubr.f32.mxu0 0.0
      %395 = vmatmul.mubr.f32.gmra.mrb[0].mxu0 %v328
      %v396 = vpop.f32.mrb[0].mxu0
      %v397 = vadd.f32 %v324, %v396
      %v398 = vpop.f32.mrb[0].mxu0
      %399 = vdwg.mxu0
      %v400 = vmul.f32 %v397, %v397
      %v401 = vsel %vm232, %v400, 0.0
      %402 = vadd.xlane.f32.xlu0 %v401
      %v403 = vpop.xlane.xlu0 %402
      %v404 = vmax.f32 %v403, 1e-24
      %v405 = vrsqrt.pop %v404
      %v406 = vmul.f32 %v397, %v405
      %407 = vst.msk [vmem:[%s219] sm:$0xff] %vm232, %v406
      %p408 = scmp.lt.s32.totalorder %s16, 1
      %s409 = scalar_select %p408, %s16, 1
      %s410 = smul.addr %s409, 8
      %s411 = scalar_lea.vmem %s5, %s410
      // Predicated region
      $region41: #{dino_head_forward.2} parent=39 // pred_check
        %p412 = pneg %p144
      $region42: #{dino_head_forward.2} parent=39 // pred_check_branch
        %414 = sbr.rel (%p412) target = $region44
      $region43: #{dino_head_forward.2} parent=39 // pred_region
        _
      $region44: #{dino_head_forward.2} parent=39 // pred_fallthru
        _
    $region40: #{dino_head_forward.2} parent=5 // pred_fallthru
      _
    %p415 = scmp.le.s32.totalorder 2, %s11
    // Predicated region
    $region45: #{dino_head_forward.2} parent=5 // pred_check
      %p416 = pneg %p415
    $region46: #{dino_head_forward.2} parent=5 // pred_check_branch
      %418 = sbr.rel (%p416) target = $region48
    $region47: #{dino_head_forward.2} parent=5 // pred_region
      %s419 = ssub.s32 %s11, 2
      // Predicated region
      $region49: #{dino_head_forward.2} parent=47 // pred_check
        %p420 = pneg %p150
      $region50: #{dino_head_forward.2} parent=47 // pred_check_branch
        %422 = sbr.rel (%p420) target = $region52
      $region51: #{dino_head_forward.2} parent=47 // pred_region
        %p423 = scmp.lt.s32.totalorder %s17, 1
        %s424 = scalar_select %p423, %s17, 1
        %s425 = smul.addr %s424, 8
        %s426 = scalar_lea.vmem %s5, %s425
      $region52: #{dino_head_forward.2} parent=47 // pred_fallthru
        _
    $region48: #{dino_head_forward.2} parent=5 // pred_fallthru
      _
  $region6: #{dino_head_forward.2} parent=0 // loop_footer
    %s15 = sadd.s32 1, %s11
  $region7: #{dino_head_forward.2} parent=0 // loop_footer_branch
    %10 = sbr.rel target = $region3
  $region8: #{dino_head_forward.2} parent=0 // loop_exit
    _

// kernel: dino_head_forward.3
$region0: #{dino_head_forward.3}
  #allocation0 [shape = 'u32[]', space=smem, size = 0x4, offset = 0x4, fixed_abs, tag = 'smem constant byte address 0x4 - core index']
  #allocation1 [shape = 'u32[144,128]{1,0:T(1,128)}', space=vmem, size = 0x12000, scoped, tag = 'internal scratch']
  #allocation2 [shape = 'f32[32,128]{1,0:T(8,128)}', space=vmem, size = 0x4000, scoped, tag = 'scratch operand']
  %s0 = inlined_call_operand.vmem [shape: f32[16,32], index: 0, kind: input, shape index: {}]
  %s1 = inlined_call_operand.vmem [shape: f32[32,256], index: 1, kind: input, shape index: {}]
  %s2 = inlined_call_operand.hbm [shape: f32[16,256], index: 2, kind: output, shape index: {}]
  %s3 = sld [smem:[#allocation0]]
  $region83: #{dino_head_forward.3} parent=0
    _
  %s5 = ssub.s32 1, %s3
  %s6 = scalar_select 0, %s5, %s3
  $region1: #{dino_head_forward.3} parent=0
    #allocation3 [shape = 'u8[32768]{0}', space=vmem, size = 0x8000, scoped, tag = 'input window, operand 1']
    #allocation4 [shape = 'u8[8192]{0}', space=vmem, size = 0x2000, scoped, tag = 'output window, operand 0']
    #allocation5 [shape = 's32[2]{0}', space=sflag, size = 0x8, scoped, tag = 'scoped memory for dino_head_forward.3']
    %7 = vsyncpa [#allocation5], 0
    %s8 = scalar_lea.sflag [#allocation5], 1
    %9 = vsyncpa %s8, 0
    loop: start=0, step=1, limit=6
    $region2: #{dino_head_forward.3} parent=1 // loop_pre_header
      _
    $region3: #{dino_head_forward.3} parent=1 // loop_header
      %s11 = sphi 0, %s15
      %p12 = scmp.ge.s32.totalorder %s11, 6
      %s18 = sphi 0, %s30
      %s19 = sphi 0, %s26
      %s20 = sphi 0, %s18
      %s21 = sphi 0, %s19
      %s22 = sphi 0, %s20
      %s23 = sphi 0, %s21
      %s33 = sphi 0, %s35
      %s36 = sphi 0, %s33
      %s37 = sphi 0, %s36
      %s53 = sphi 0, %s37
      %s59 = sphi 0, %s61
      %s62 = sphi 0, %s59
      %s63 = sphi 0, %s62
      %s79 = sphi 0, %s63
      %s87 = sphi 0, %s89
      %s90 = sphi 0, %s87
      %s91 = sphi 0, %s90
      %s107 = sphi 0, %s91
    $region4: #{dino_head_forward.3} parent=1 // loop_header_branch
      %14 = sbr.rel (%p12) target = $region8
    $region5: #{dino_head_forward.3} parent=1 // loop_body
      %s16 = ssub.s32 %s11, 1
      %s17 = ssub.s32 %s11, 2
      %s24 = sadd.s32 1, %s19
      %p25 = scmp.ge.s32.totalorder %s24, 2
      %s26 = scalar_select %p25, 0, %s24
      %s27 = sadd.s32 1, %s18
      %s28 = scalar_select %p25, %s27, %s18
      %p29 = scmp.ge.s32.totalorder %s28, 2
      %s30 = scalar_select %p29, 0, %s28
      %s31 = ssub.s32 %s19, %s26
      %p32 = scmp.eq.s32.totalorder %s31, 0
      %s34 = sadd.s32 %s33, 1
      %s35 = scalar_select %p32, %s33, %s34
      %p38 = pneg %p32
      %p39 = scmp.eq.s32.totalorder %s11, 3
      %p40 = por %p38, %p39
      %p41 = scmp.ne.s32.totalorder %s33, %s36
      %p42 = scmp.eq.s32.totalorder %s11, 0
      %p43 = por %p41, %p42
      %p44 = scmp.ne.s32.totalorder %s33, %s36
      %p45 = scmp.eq.s32.totalorder %s16, 3
      %p46 = por %p44, %p45
      %p47 = scmp.ne.s32.totalorder %s36, %s37
      %p48 = scmp.eq.s32.totalorder %s16, 0
      %p49 = por %p47, %p48
      %p50 = scmp.ne.s32.totalorder %s36, %s37
      %p51 = scmp.eq.s32.totalorder %s17, 3
      %p52 = por %p50, %p51
      %p54 = scmp.ne.s32.totalorder %s37, %s53
      %p55 = scmp.eq.s32.totalorder %s17, 0
      %p56 = por %p54, %p55
      %s57 = ssub.s32 %s18, %s30
      %p58 = scmp.eq.s32.totalorder %s57, 0
      %s60 = sadd.s32 %s59, 1
      %s61 = scalar_select %p58, %s59, %s60
      %p64 = pneg %p58
      %p65 = scmp.eq.s32.totalorder %s11, 3
      %p66 = por %p64, %p65
      %p67 = scmp.ne.s32.totalorder %s59, %s62
      %p68 = scmp.eq.s32.totalorder %s11, 0
      %p69 = por %p67, %p68
      %p70 = scmp.ne.s32.totalorder %s59, %s62
      %p71 = scmp.eq.s32.totalorder %s16, 3
      %p72 = por %p70, %p71
      %p73 = scmp.ne.s32.totalorder %s62, %s63
      %p74 = scmp.eq.s32.totalorder %s16, 0
      %p75 = por %p73, %p74
      %p76 = scmp.ne.s32.totalorder %s62, %s63
      %p77 = scmp.eq.s32.totalorder %s17, 3
      %p78 = por %p76, %p77
      %p80 = scmp.ne.s32.totalorder %s63, %s79
      %p81 = scmp.eq.s32.totalorder %s17, 0
      %p82 = por %p80, %p81
      %s83 = ssub.s32 %s19, %s26
      %s84 = ssub.s32 %s18, %s30
      %s85 = sor.u32 %s83, %s84
      %p86 = scmp.eq.s32.totalorder %s85, 0
      %s88 = sadd.s32 %s87, 1
      %s89 = scalar_select %p86, %s87, %s88
      %p92 = pneg %p86
      %p93 = scmp.eq.s32.totalorder %s11, 3
      %p94 = por %p92, %p93
      %p95 = scmp.ne.s32.totalorder %s87, %s90
      %p96 = scmp.eq.s32.totalorder %s11, 0
      %p97 = por %p95, %p96
      %p98 = scmp.ne.s32.totalorder %s87, %s90
      %p99 = scmp.eq.s32.totalorder %s16, 3
      %p100 = por %p98, %p99
      %p101 = scmp.ne.s32.totalorder %s90, %s91
      %p102 = scmp.eq.s32.totalorder %s16, 0
      %p103 = por %p101, %p102
      %p104 = scmp.ne.s32.totalorder %s90, %s91
      %p105 = scmp.eq.s32.totalorder %s17, 3
      %p106 = por %p104, %p105
      %p108 = scmp.ne.s32.totalorder %s91, %s107
      %p109 = scmp.eq.s32.totalorder %s17, 0
      %p110 = por %p108, %p109
      %p111 = scmp.le.s32.totalorder 1, %s11
      %p112 = scmp.lt.s32.totalorder %s11, 5
      %p113 = pnand %p111, %p112
      %p114 = pneg %p113
      // Predicated region
      $region9: #{dino_head_forward.3} parent=5 // pred_check
        _
      $region10: #{dino_head_forward.3} parent=5 // pred_check_branch
        %116 = sbr.rel (%p113) target = $region12
      $region11: #{dino_head_forward.3} parent=5 // pred_region
        %s117 = ssub.s32 %s11, 1
      $region12: #{dino_head_forward.3} parent=5 // pred_fallthru
        _
      %p118 = scmp.lt.s32.totalorder %s11, 4
      // Predicated region
      $region13: #{dino_head_forward.3} parent=5 // pred_check
        %p119 = pneg %p118
      $region14: #{dino_head_forward.3} parent=5 // pred_check_branch
        %121 = sbr.rel (%p119) target = $region16
      $region15: #{dino_head_forward.3} parent=5 // pred_region
        // Predicated region
        $region17: #{dino_head_forward.3} parent=15 // pred_check
          %p122 = pneg %p43
        $region18: #{dino_head_forward.3} parent=15 // pred_check_branch
          %124 = sbr.rel (%p122) target = $region20
        $region19: #{dino_head_forward.3} parent=15 // pred_region
          %p125 = scmp.lt.s32.totalorder %s19, 1
          %s126 = scalar_select %p125, %s19, 1
          %s127 = smul.addr %s126, 8
          %s128 = scalar_lea.vmem %s0, %s127
        $region20: #{dino_head_forward.3} parent=15 // pred_fallthru
          _
        // Predicated region
        $region21: #{dino_head_forward.3} parent=15 // pred_check
          %p129 = pneg %p69
        $region22: #{dino_head_forward.3} parent=15 // pred_check_branch
          %131 = sbr.rel (%p129) target = $region24
        $region23: #{dino_head_forward.3} parent=15 // pred_region
          %s132 = sand.u32 %s59, 1
          %s133 = sand.u32 %s59, 1
          %s134 = smul.addr %s133, 32
          %s135 = scalar_lea.vmem [#allocation3], %s134
          %s136 = smul.addr %s18, 8
          %s137 = scalar_lea.vmem %s1, %s136
          // Predicated region
          $region25: #{dino_head_forward.3} parent=23 // pred_check
            _
          $region26: #{dino_head_forward.3} parent=23 // pred_check_branch
            %139 = sbr.rel (0) target = $region28
          $region27: #{dino_head_forward.3} parent=23 // pred_region
            // Predicated region
            $region29: #{dino_head_forward.3} parent=27 // pred_check
              _
            $region30: #{dino_head_forward.3} parent=27 // pred_check_branch
              %141 = sbr.rel (0) target = $region32
            $region31: #{dino_head_forward.3} parent=27 // pred_region
              // Predicated region
              $region44: #{dino_head_forward.3} parent=31 // pred_check
                _
              $region45: #{dino_head_forward.3} parent=31 // pred_check_branch
                %162 = sbr.rel (0) target = $region47
              $region46: #{dino_head_forward.3} parent=31 // pred_region
                loop: start=0, step=1, limit=1
                $region48: #{dino_head_forward.3} parent=46 // loop_pre_header
                  _
                $region49: #{dino_head_forward.3} parent=46 // loop_header
                  %s164 = sphi 0, %s168
                  %p165 = scmp.ge.s32.totalorder %s164, 1
                  %s169 = sphi %s137, %s137
                  %s170 = sphi %s135, %s135
                $region50: #{dino_head_forward.3} parent=46 // loop_header_branch
                  %167 = sbr.rel (%p165) target = $region54
                $region51: #{dino_head_forward.3} parent=46 // loop_body
                  %v171 = vld [vmem:[%s169] sm:$0xff]
                  %172 = vst [vmem:[%s170] sm:$0xff] %v171
                  %v173 = vld [vmem:[%s169 + $0x10] sm:$0xff]
                  %174 = vst [vmem:[%s170 + $0x8] sm:$0xff] %v173
                  %v175 = vld [vmem:[%s169 + $0x20] sm:$0xff]
                  %176 = vst [vmem:[%s170 + $0x10] sm:$0xff] %v175
                  %v177 = vld [vmem:[%s169 + $0x30] sm:$0xff]
                  %178 = vst [vmem:[%s170 + $0x18] sm:$0xff] %v177
                $region52: #{dino_head_forward.3} parent=46 // loop_footer
                  %s168 = sadd.s32 1, %s164
                $region53: #{dino_head_forward.3} parent=46 // loop_footer_branch
                  %163 = sbr.rel target = $region49
                $region54: #{dino_head_forward.3} parent=46 // loop_exit
                  _
              $region47: #{dino_head_forward.3} parent=31 // pred_fallthru
                _
              // Predicated region
              $region55: #{dino_head_forward.3} parent=31 // pred_check
                _
              $region56: #{dino_head_forward.3} parent=31 // pred_check_branch
                %180 = sbr.rel target = $region58
              $region57: #{dino_head_forward.3} parent=31 // pred_region
                _
              $region58: #{dino_head_forward.3} parent=31 // pred_fallthru
                _
            $region32: #{dino_head_forward.3} parent=27 // pred_fallthru
              _
            // Predicated region
            $region33: #{dino_head_forward.3} parent=27 // pred_check
              _
            $region34: #{dino_head_forward.3} parent=27 // pred_check_branch
              %143 = sbr.rel target = $region36
            $region35: #{dino_head_forward.3} parent=27 // pred_region
              loop: start=0, step=1, limit=1
              $region37: #{dino_head_forward.3} parent=35 // loop_pre_header
                _
              $region38: #{dino_head_forward.3} parent=35 // loop_header
                %s146 = sphi 0, %s150
                %p147 = scmp.ge.s32.totalorder %s146, 1
                %s151 = sphi %s137, %s137
                %s152 = sphi %s135, %s135
              $region39: #{dino_head_forward.3} parent=35 // loop_header_branch
                %149 = sbr.rel (%p147) target = $region43
              $region40: #{dino_head_forward.3} parent=35 // loop_body
                %v153 = vld [vmem:[%s151] sm:$0xff]
                %154 = vst [vmem:[%s152] sm:$0xff] %v153
                %v155 = vld [vmem:[%s151 + $0x10] sm:$0xff]
                %156 = vst [vmem:[%s152 + $0x8] sm:$0xff] %v155
                %v157 = vld [vmem:[%s151 + $0x20] sm:$0xff]
                %158 = vst [vmem:[%s152 + $0x10] sm:$0xff] %v157
                %v159 = vld [vmem:[%s151 + $0x30] sm:$0xff]
                %160 = vst [vmem:[%s152 + $0x18] sm:$0xff] %v159
              $region41: #{dino_head_forward.3} parent=35 // loop_footer
                %s150 = sadd.s32 1, %s146
              $region42: #{dino_head_forward.3} parent=35 // loop_footer_branch
                %145 = sbr.rel target = $region38
              $region43: #{dino_head_forward.3} parent=35 // loop_exit
                _
            $region36: #{dino_head_forward.3} parent=27 // pred_fallthru
              _
          $region28: #{dino_head_forward.3} parent=23 // pred_fallthru
            _
          %181 = vnop
        $region24: #{dino_head_forward.3} parent=15 // pred_fallthru
          _
      $region16: #{dino_head_forward.3} parent=5 // pred_fallthru
        _
      %p182 = scmp.le.s32.totalorder 1, %s11
      %p183 = scmp.lt.s32.totalorder %s11, 5
      %p184 = pnand %p182, %p183
      %p185 = pneg %p184
      // Predicated region
      $region59: #{dino_head_forward.3} parent=5 // pred_check
        _
      $region60: #{dino_head_forward.3} parent=5 // pred_check_branch
        %187 = sbr.rel (%p184) target = $region62
      $region61: #{dino_head_forward.3} parent=5 // pred_region
        %s188 = ssub.s32 %s11, 1
        %s189 = sand.u32 %s62, 1
        %s190 = sand.u32 %s62, 1
        %s191 = smul.addr %s190, 32
        %s192 = scalar_lea.vmem [#allocation3], %s191
        // Predicated region
        $region63: #{dino_head_forward.3} parent=61 // pred_check
          %p193 = pneg %p75
        $region64: #{dino_head_forward.3} parent=61 // pred_check_branch
          %195 = sbr.rel (%p193) target = $region66
        $region65: #{dino_head_forward.3} parent=61 // pred_region
          _
        $region66: #{dino_head_forward.3} parent=61 // pred_fallthru
          _
        %p196 = scmp.lt.s32.totalorder %s21, 1
        %s197 = scalar_select %p196, %s21, 1
        %s198 = smul.addr %s197, 8
        %s199 = scalar_lea.vmem %s0, %s198
        %p200 = pneg %p49
        %p201 = pneg %p46
        %s202 = sand.u32 %s62, 1
        %s203 = sand.u32 %s62, 1
        %s204 = smul.addr %s203, 32
        %s205 = scalar_lea.vmem [#allocation3], %s204
        %p206 = pneg %p75
        %p207 = pneg %p72
        %p208 = pneg %p103
        %p209 = pneg %p100
        %s210 = sand.u32 %s90, 1
        %s211 = scalar_lea.sflag [#allocation5], %s210
        %s212 = sand.u32 %s90, 1
        %s213 = smul.addr %s212, 8
        %s214 = scalar_lea.vmem [#allocation4], %s213
        %p215 = scmp.lt.s32.totalorder %s21, 1
        %s216 = scalar_select %p215, %s21, 1
        %s217 = smul.addr %s216, 8
        %s218 = scalar_lea.vmem %s0, %s217
        %p219 = scmp.eq.s32.totalorder %s21, 0
        // Predicated region
        $region67: #{dino_head_forward.3} parent=61 // pred_check
          %p220 = pneg %p219
        $region68: #{dino_head_forward.3} parent=61 // pred_check_branch
          %222 = sbr.rel (%p220) target = $region70
        $region69: #{dino_head_forward.3} parent=61 // pred_region
          %v223 = vld [vmem:[%s192] sm:$0xff]
          %v224 = vld [vmem:[%s192 + $0x8] sm:$0xff]
          %v225 = vld [vmem:[%s192 + $0x10] sm:$0xff]
          %v226 = vld [vmem:[%s192 + $0x18] sm:$0xff]
          %v227 = vmul.f32 %v223, %v223
          %v228 = vmul.f32 %v224, %v224
          %v229 = vmul.f32 %v225, %v225
          %v230 = vmul.f32 %v226, %v226
          %v231 = vadd.f32 %v227, %v228
          %v232 = vadd.f32 %v231, %v229
          %v233 = vadd.f32 %v232, %v230
          %v234 = vrot.slane %v233, 4
          %v235 = vadd.f32 %v233, %v234
          %v236 = vrot.slane %v235, 2
          %v237 = vadd.f32 %v235, %v236
          %v238 = vrot.slane %v237, 1
          %v239 = vadd.f32 %v237, %v238
          %v240 = vrsqrt.pop %v239
          %v241 = vmul.f32 %v223, %v240
          %v242 = vmul.f32 %v224, %v240
          %v243 = vmul.f32 %v225, %v240
          %v244 = vmul.f32 %v226, %v240
          %245 = vst [vmem:[#allocation2] sm:$0xff] %v241
          %246 = vst [vmem:[#allocation2 + $0x8] sm:$0xff] %v242
          %247 = vst [vmem:[#allocation2 + $0x10] sm:$0xff] %v243
          %248 = vst [vmem:[#allocation2 + $0x18] sm:$0xff] %v244
        $region70: #{dino_head_forward.3} parent=61 // pred_fallthru
          _
        %v249 = vld [vmem:[%s218] sm:$0xff]
        %v250 = vld [vmem:[#allocation2] sm:$0xff]
        %v251 = vld [vmem:[#allocation2 + $0x8] sm:$0xff]
        %v252 = vld [vmem:[#allocation2 + $0x10] sm:$0xff]
        %v253 = vld [vmem:[#allocation2 + $0x18] sm:$0xff]
        %vm254 = vcmask 261120
        %v256 = vsel %vm254, %v249, 0
        %258 = vmatprep.subr.mxu0 0.0
        %259 = vmatpush1.msra.mxu0 %v250
        %260 = vmatprep.subr.mxu0 0.0
        %261 = vmatpush1.msra.mxu0 %v251
        %262 = vmatprep.subr.mxu0 0.0
        %263 = vmatpush1.msra.mxu0 %v252
        %264 = vmatprep.subr.mxu0 0.0
        %265 = vmatpush1.msra.mxu0 %v253
        %266 = vmatprep.subr.mxu0 0.0
        %267 = vmatpush1.msra.mxu0 0.0
        %268 = vmatprep.subr.mxu0 0.0
        %269 = vmatpush1.msra.mxu0 0.0
        %270 = vmatprep.subr.mxu0 0.0
        %271 = vmatpush1.msra.mxu0 0.0
        %272 = vmatprep.subr.mxu0 0.0
        %273 = vmatpush1.msra.mxu0 0.0
        %274 = vmatprep.subr.mxu0 0.0
        %275 = vmatpush1.msra.mxu0 0.0
        %276 = vmatprep.subr.mxu0 0.0
        %277 = vmatpush1.msra.mxu0 0.0
        %278 = vmatprep.subr.mxu0 0.0
        %279 = vmatpush1.msra.mxu0 0.0
        %280 = vmatprep.subr.mxu0 0.0
        %281 = vmatpush1.msra.mxu0 0.0
        %282 = vmatprep.subr.mxu0 0.0
        %283 = vmatpush1.msra.mxu0 0.0
        %284 = vmatprep.subr.mxu0 0.0
        %285 = vmatpush1.msra.mxu0 0.0
        %286 = vmatprep.subr.mxu0 0.0
        %287 = vmatpush1.msra.mxu0 0.0
        %288 = vmatprep.subr.mxu0 0.0
        %289 = vmatpush1.msra.mxu0 0.0
        %290 = vmatprep.subr.mxu0 0.0
        %291 = vmatpush1.msra.mxu0 0.0
        %292 = vmatprep.subr.mxu0 0.0
        %293 = vmatpush1.msra.mxu0 0.0
        %294 = vmatprep.subr.mxu0 0.0
        %295 = vmatpush1.msra.mxu0 0.0
        %296 = vmatprep.subr.mxu0 0.0
        %297 = vmatpush1.msra.mxu0 0.0
        %298 = vmatprep.subr.mxu0 0.0
        %299 = vmatpush1.msra.mxu0 0.0
        %300 = vmatprep.subr.mxu0 0.0
        %301 = vmatpush1.msra.mxu0 0.0
        %302 = vmatprep.subr.mxu0 0.0
        %303 = vmatpush1.msra.mxu0 0.0
        %304 = vmatprep.subr.mxu0 0.0
        %305 = vmatpush1.msra.mxu0 0.0
        %306 = vmatprep.subr.mxu0 0.0
        %307 = vmatpush1.msra.mxu0 0.0
        %308 = vmatprep.subr.mxu0 0.0
        %309 = vmatpush1.msra.mxu0 0.0
        %310 = vmatprep.subr.mxu0 0.0
        %311 = vmatpush1.msra.mxu0 0.0
        %312 = vmatprep.subr.mxu0 0.0
        %313 = vmatpush1.msra.mxu0 0.0
        %314 = vmatprep.subr.mxu0 0.0
        %315 = vmatpush1.msra.mxu0 0.0
        %316 = vmatprep.subr.mxu0 0.0
        %317 = vmatpush1.msra.mxu0 0.0
        %318 = vmatprep.subr.mxu0 0.0
        %319 = vmatpush1.msra.mxu0 0.0
        %320 = vmatprep.subr.mxu0 0.0
        %321 = vmatpush1.msra.mxu0 0.0
        %322 = vmatprep.mubr.f32.mxu0 0.0
        %323 = vmatmul.mubr.f32.gmra.mrb[0].mxu0 %v256
        %v324 = vpop.f32.mrb[0].mxu0
        %v325 = vadd.f32 0.0, %v324
        %v326 = vpop.f32.mrb[0].mxu0
        %327 = vdwg.mxu0
        %328 = vst [vmem:[%s214] sm:$0xff] %v325
        %s329 = sand.u32 %s90, 1
        %s330 = scalar_lea.sflag [#allocation5], %s329
        %s331 = sand.u32 %s90, 1
        %s332 = smul.addr %s331, 8
        %s333 = scalar_lea.vmem [#allocation4], %s332
        // Predicated region
        $region71: #{dino_head_forward.3} parent=61 // pred_check
          %p334 = pneg %p100
        $region72: #{dino_head_forward.3} parent=61 // pred_check_branch
          %336 = sbr.rel (%p334) target = $region74
        $region73: #{dino_head_forward.3} parent=61 // pred_region
          %s338 = ssub.s32 128, 128
          %339 = vsyncadd %s330, %s338
          %s340 = smul.addr %s21, 2
          %s341 = sadd.s32 %s20, %s340
          %s342 = smul.addr %s341, 128
          %s343 = scalar_lea.hbm %s2, %s342
          %s345 = sshll.u32 %s333, 4
          %s346 = int_to_ptr.vmem [resolvable:$true] %s345
          %348 = dma.vmem_to_hbm [thread:$0]  %s346, 128, %s343, %s330
        $region74: #{dino_head_forward.3} parent=61 // pred_fallthru
          _
      $region62: #{dino_head_forward.3} parent=5 // pred_fallthru
        _
      %p349 = scmp.le.s32.totalorder 2, %s11
      // Predicated region
      $region75: #{dino_head_forward.3} parent=5 // pred_check
        %p350 = pneg %p349
      $region76: #{dino_head_forward.3} parent=5 // pred_check_branch
        %352 = sbr.rel (%p350) target = $region78
      $region77: #{dino_head_forward.3} parent=5 // pred_region
        %s353 = ssub.s32 %s11, 2
        // Predicated region
        $region79: #{dino_head_forward.3} parent=77 // pred_check
          %p354 = pneg %p106
        $region80: #{dino_head_forward.3} parent=77 // pred_check_branch
          %356 = sbr.rel (%p354) target = $region82
        $region81: #{dino_head_forward.3} parent=77 // pred_region
          %s357 = sand.u32 %s91, 1
          %s358 = scalar_lea.sflag [#allocation5], %s357
          %s359 = sand.u32 %s91, 1
          %s360 = smul.addr %s359, 8
          %s361 = scalar_lea.vmem [#allocation4], %s360
          %362 = dma.done %s358, 128
        $region82: #{dino_head_forward.3} parent=77 // pred_fallthru
          _
      $region78: #{dino_head_forward.3} parent=5 // pred_fallthru
        _
    $region6: #{dino_head_forward.3} parent=1 // loop_footer
      %s15 = sadd.s32 1, %s11
    $region7: #{dino_head_forward.3} parent=1 // loop_footer_branch
      %10 = sbr.rel target = $region3
    $region8: #{dino_head_forward.3} parent=1 // loop_exit
      _
    %363 = vsyncpa [#allocation5], 1
    %s364 = scalar_lea.sflag [#allocation5], 1
    %365 = vsyncpa %s364, 1

</llo_original>
